<compile_context>
chip_gen: v5e
topology: v5e:2x2
jax: 0.10.0
libtpu: 0.0.40
codegen_flags: <defaults>
</compile_context>

<pallas_src>
import math
import jax
import jax.numpy as jnp
from jax import lax
from jax.experimental import pallas as pl
from jax.experimental.pallas import tpu as pltpu

# dimension_numbers for "x @ W.T" with W in PyTorch (out, in) layout:
_DN_TRANS_RHS = (((1,), (1,)), ((), ()))


def _prt_cls_kernel(
    query_ref,      # (B, dim)            f32
    prt_ref,        # (nc, dim)           f32
    w_s1_ref,       # (dim+hid, dim)      bf16  [linear1 ; fc1] stacked on out axis
    w_s2_ref,       # (2*dim, dim+hid)    bf16  block-diag [[linear2,0],[0,fc2]]
    blob_ref,       # (3+nc, 2*dim)       f32   packed small params (see prepare_params)
    logit_ref,      # out: (B, nc)        f32
    prt_out_ref,    # out: (nc, dim)      f32
):
    nc, dim = prt_out_ref.shape
    dh = w_s1_ref.shape[0]                       # dim + hid

    # ---- unpack the single small-parameter blob (static slices, all f32) ----
    blob = blob_ref[...]
    b_s1 = blob[0:1, :dh]                        # (1, dim+hid)  [b_lin1 ; b_fc1]
    b_s2 = blob[1:2, :]                          # (1, 2*dim)    [b_lin2 ; b_fc2]
    cbias = blob[2:3, :nc]                       # (1, nc)
    wbias = blob[3:3 + nc, :dim]                 # (nc, dim)     weight_bias

    prt = prt_ref[...].astype(jnp.bfloat16)

    # ---- stage 1 (fused): [linear1(prt) ; fc1(prt)] in one MXU push ----
    ph = lax.dot_general(prt, w_s1_ref[...], _DN_TRANS_RHS,
                         preferred_element_type=jnp.float32)
    ph = jnp.maximum(ph + b_s1, 0.0)             # relu, f32, (nc, dim+hid)

    # ---- stage 2 (block-diag fused): [linear2(p1) ; fc2(h)] in one push ----
    s2 = lax.dot_general(ph.astype(jnp.bfloat16), w_s2_ref[...], _DN_TRANS_RHS,
                         preferred_element_type=jnp.float32)
    s2 = s2 + b_s2                               # (nc, 2*dim), f32
    p = s2[:, :dim]                              # linear2(relu(linear1(prt)))
    g = jax.nn.sigmoid(s2[:, dim:])              # sigmoid(fc2(relu(fc1(prt))))

    # ---- combine: prt_r = weight_bias + p * g  (all f32) ----
    prt_r = wbias + p * g
    prt_out_ref[...] = prt_r.astype(prt_out_ref.dtype)

    # ---- classifier: logit = query @ prt_r.T + bias (f32 operands so logit is
    #      consistent with the stored f32 prt_out) ----
    logit = lax.dot_general(query_ref[...], prt_r, _DN_TRANS_RHS,
                            preferred_element_type=jnp.float32)
    logit_ref[...] = (logit + cbias).astype(logit_ref.dtype)


def prepare_params(params, compute_dtype=jnp.bfloat16):
    """One-time parameter packing (outside the per-call hot path).

      * w_s1 : (dim+hid, dim)  bf16  [linear1 ; fc1]  (dim-slab first -> lane aligned)
      * w_s2 : (2*dim, dim+hid) bf16 block-diag [[linear2, 0], [0, fc2]]
      * blob : (3+nc, 2*dim) f32 -- all small parameters in ONE array:
          row 0, [:dim+hid]   = [b_lin1 ; b_fc1]
          row 1, [:2*dim]     = [b_lin2 ; b_fc2]
          row 2, [:nc]        = classifier bias
          rows 3..3+nc, [:dim] = weight_bias
    """
    dim = params["w_lin1"].shape[0]
    hid = params["w_fc1"].shape[0]
    nc = params["weight_bias"].shape[0]
    dh = dim + hid

    w_s1 = jnp.concatenate([params["w_lin1"], params["w_fc1"]], axis=0)

    w_s2 = jnp.zeros((2 * dim, dh), jnp.float32)
    w_s2 = w_s2.at[:dim, :dim].set(params["w_lin2"])
    w_s2 = w_s2.at[dim:, dim:].set(params["w_fc2"])

    blob = jnp.zeros((3 + nc, 2 * dim), jnp.float32)
    blob = blob.at[0, :dh].set(
        jnp.concatenate([params["b_lin1"], params["b_fc1"]]).astype(jnp.float32))
    blob = blob.at[1, :dim].set(params["b_lin2"].astype(jnp.float32))
    blob = blob.at[1, dim:].set(params["b_fc2"].astype(jnp.float32))
    blob = blob.at[2, :nc].set(params["bias"].astype(jnp.float32))
    blob = blob.at[3:3 + nc, :dim].set(params["weight_bias"].astype(jnp.float32))

    return dict(
        w_s1=w_s1.astype(compute_dtype),     # (dim+hid, dim)
        w_s2=w_s2.astype(compute_dtype),     # (2*dim, dim+hid)
        blob=blob,                           # (3+nc, 2*dim) f32
    )


def prt_cls_layer(query, cls_prt, prep):
    """Fused PrtClsLayer forward. Returns (logit, refined_cls_prt)."""
    B, dim = query.shape
    nc, _ = cls_prt.shape
    hid = prep["w_s1"].shape[0] - dim

    inputs = (query, cls_prt, prep["w_s1"], prep["w_s2"], prep["blob"])

    # Single grid step, everything resident in VMEM (~150 KiB) -> no block
    # pipelining, no double-buffering of the resident weights.
    in_specs = [pl.BlockSpec(memory_space=pltpu.MemorySpace.VMEM) for _ in inputs]
    out_specs = (
        pl.BlockSpec(memory_space=pltpu.MemorySpace.VMEM),
        pl.BlockSpec(memory_space=pltpu.MemorySpace.VMEM),
    )
    out_shape = (
        jax.ShapeDtypeStruct((B, nc), jnp.float32),
        jax.ShapeDtypeStruct((nc, dim), jnp.float32),
    )

    flops = (
        2 * nc * dim * (dim + hid)        # fused stage 1 (linear1 + fc1)
        + 2 * nc * (2 * dim) * (dim + hid)  # fused stage 2 (linear2 + fc2, block-diag)
        + 2 * B * dim * nc                # classifier
    )
    bytes_accessed = (
        sum(int(x.size) * x.dtype.itemsize for x in inputs)
        + (B * nc + nc * dim) * 4
    )
    cost = pl.CostEstimate(flops=flops, transcendentals=nc * dim,
                           bytes_accessed=bytes_accessed)

    # TODO(synk): if this layer is called many times (per step / pyramid level),
    # batch the calls behind a leading grid axis with constant weight index_maps
    # so the weight slab stays resident; on v7x mark independent axes "parallel"
    # to use both TensorCores, and re-derive VMEM budget against 64 MiB. If nc
    # scales, pad nc to a multiple of 128 for a lane-dense logit store.
    return pl.pallas_call(
        _prt_cls_kernel,
        in_specs=in_specs,
        out_specs=out_specs,
        out_shape=out_shape,
        cost_estimate=cost,
        compiler_params=pltpu.CompilerParams(vmem_limit_bytes=32 * 1024 * 1024),
    )(*inputs)


def init_params(key, nc, na, dim):
    """Deterministic synthetic init mirroring the PyTorch __init__ shapes (f32)."""
    ks = jax.random.split(key, 12)

    def linear_init(kw, kb, out_f, in_f):
        bound = 1.0 / math.sqrt(in_f)
        w = jax.random.uniform(kw, (out_f, in_f), jnp.float32, -bound, bound)
        b = jax.random.uniform(kb, (out_f,), jnp.float32, -bound, bound)
        return w, b

    w_lin1, b_lin1 = linear_init(ks[0], ks[1], dim, dim)
    w_lin2, b_lin2 = linear_init(ks[2], ks[3], dim, dim)
    w_fc1, b_fc1 = linear_init(ks[4], ks[5], dim // na, dim)
    w_fc2, b_fc2 = linear_init(ks[6], ks[7], dim, dim // na)

    wb_bound = 1.0 / math.sqrt(dim)
    weight_bias = jax.random.uniform(ks[8], (nc, dim), jnp.float32, -wb_bound, wb_bound)
    bias = jax.random.uniform(ks[9], (nc,), jnp.float32, -wb_bound, wb_bound)

    return dict(
        w_lin1=w_lin1, b_lin1=b_lin1,
        w_lin2=w_lin2, b_lin2=b_lin2,
        w_fc1=w_fc1, b_fc1=b_fc1,
        w_fc2=w_fc2, b_fc2=b_fc2,
        weight_bias=weight_bias, bias=bias,
    )


def reference_forward(query, cls_prt, p):
    """Pure-JAX f32 reference matching the PyTorch forward."""
    relu = lambda x: jnp.maximum(x, 0.0)
    lin = lambda x, w, b: x @ w.T + b
    w = jax.nn.sigmoid(lin(relu(lin(cls_prt, p["w_fc1"], p["b_fc1"])), p["w_fc2"], p["b_fc2"]))
    prt = lin(relu(lin(cls_prt, p["w_lin1"], p["b_lin1"])), p["w_lin2"], p["b_lin2"])
    prt = p["weight_bias"] + prt * w
    logit = query @ prt.T + p["bias"]
    return logit, prt


if __name__ == "__main__":
    nc, na, dim = 8, 4, 128
    B = 8

    key = jax.random.PRNGKey(0)
    kq, kp, kparams = jax.random.split(key, 3)

    query = jax.random.normal(kq, (B, dim), jnp.float32)
    cls_prt = jax.random.normal(kp, (nc, dim), jnp.float32)
    params = init_params(kparams, nc, na, dim)
    prep = prepare_params(params)          # one-time packing + bf16 cast

    logit, prt_refined = prt_cls_layer(query, cls_prt, prep)
    jax.block_until_ready((logit, prt_refined))

    ref_logit, ref_prt = reference_forward(query, cls_prt, params)
    # Tolerances reflect bf16 MXU weight operands with f32 accumulation;
    # the reference is pure f32.
    assert jnp.allclose(logit, ref_logit, atol=5e-2, rtol=5e-2)
    assert jnp.allclose(prt_refined, ref_prt, atol=5e-2, rtol=5e-2)

    print("KERNEL_OK")
</pallas_src>

<mosaic_0001>
module attributes {stable_mosaic.version = 11 : i64} {
  func.func @_prt_cls_kernel(%arg0: memref<8x128xf32, #tpu.memory_space<vmem>>, %arg1: memref<8x128xf32, #tpu.memory_space<vmem>>, %arg2: memref<160x128xbf16, #tpu.memory_space<vmem>>, %arg3: memref<256x160xbf16, #tpu.memory_space<vmem>>, %arg4: memref<11x256xf32, #tpu.memory_space<vmem>>, %arg5: memref<8x8xf32, #tpu.memory_space<vmem>>, %arg6: memref<8x128xf32, #tpu.memory_space<vmem>>) attributes {dimension_semantics = [], scalar_prefetch = 0 : i64, scratch_operands = 0 : i64, tpu.core_type = #tpu.core_type<tc>} {
    %c0 = arith.constant 0 : index
    %c0_0 = arith.constant 0 : index
    %0 = vector.load %arg4[%c0, %c0_0] : memref<11x256xf32, #tpu.memory_space<vmem>>, vector<11x256xf32>
    %1 = vector.extract_strided_slice %0 {offsets = [0, 0], sizes = [1, 160], strides = [1, 1]} : vector<11x256xf32> to vector<1x160xf32>
    %2 = vector.extract_strided_slice %0 {offsets = [1, 0], sizes = [1, 256], strides = [1, 1]} : vector<11x256xf32> to vector<1x256xf32>
    %3 = vector.extract_strided_slice %0 {offsets = [2, 0], sizes = [1, 8], strides = [1, 1]} : vector<11x256xf32> to vector<1x8xf32>
    %4 = vector.extract_strided_slice %0 {offsets = [3, 0], sizes = [8, 128], strides = [1, 1]} : vector<11x256xf32> to vector<8x128xf32>
    %c0_1 = arith.constant 0 : index
    %c0_2 = arith.constant 0 : index
    %5 = vector.load %arg1[%c0_1, %c0_2] : memref<8x128xf32, #tpu.memory_space<vmem>>, vector<8x128xf32>
    %6 = arith.truncf %5 : vector<8x128xf32> to vector<8x128xbf16>
    %c0_3 = arith.constant 0 : index
    %c0_4 = arith.constant 0 : index
    %7 = vector.load %arg2[%c0_3, %c0_4] : memref<160x128xbf16, #tpu.memory_space<vmem>>, vector<160x128xbf16>
    %cst = arith.constant dense<0.000000e+00> : vector<8x160xf32>
    %8 = tpu.matmul %6, %7, %cst {dimension_numbers = #tpu.dot_dimension_numbers<[1], [1], [0], [0], [0, 0, 1, 0], [], []>} : vector<8x128xbf16>, vector<160x128xbf16>, vector<8x160xf32> -> vector<8x160xf32>
    %9 = vector.broadcast %1 : vector<1x160xf32> to vector<8x160xf32>
    %10 = arith.addf %8, %9 : vector<8x160xf32>
    %cst_5 = arith.constant 0.000000e+00 : f32
    %11 = vector.broadcast %cst_5 : f32 to vector<8x160xf32>
    %12 = arith.maximumf %10, %11 : vector<8x160xf32>
    %13 = arith.truncf %12 : vector<8x160xf32> to vector<8x160xbf16>
    %c0_6 = arith.constant 0 : index
    %c0_7 = arith.constant 0 : index
    %14 = vector.load %arg3[%c0_6, %c0_7] : memref<256x160xbf16, #tpu.memory_space<vmem>>, vector<256x160xbf16>
    %cst_8 = arith.constant dense<0.000000e+00> : vector<8x256xf32>
    %15 = tpu.matmul %13, %14, %cst_8 {dimension_numbers = #tpu.dot_dimension_numbers<[1], [1], [0], [0], [0, 0, 1, 0], [], []>} : vector<8x160xbf16>, vector<256x160xbf16>, vector<8x256xf32> -> vector<8x256xf32>
    %16 = vector.broadcast %2 : vector<1x256xf32> to vector<8x256xf32>
    %17 = arith.addf %15, %16 : vector<8x256xf32>
    %18 = vector.extract_strided_slice %17 {offsets = [0, 0], sizes = [8, 128], strides = [1, 1]} : vector<8x256xf32> to vector<8x128xf32>
    %19 = vector.extract_strided_slice %17 {offsets = [0, 128], sizes = [8, 128], strides = [1, 1]} : vector<8x256xf32> to vector<8x128xf32>
    %20 = arith.negf %19 : vector<8x128xf32>
    %21 = math.exp %20 : vector<8x128xf32>
    %cst_9 = arith.constant 1.000000e+00 : f32
    %22 = vector.broadcast %cst_9 : f32 to vector<8x128xf32>
    %23 = arith.addf %22, %21 : vector<8x128xf32>
    %24 = arith.divf %22, %23 : vector<8x128xf32>
    %25 = arith.mulf %18, %24 : vector<8x128xf32>
    %26 = arith.addf %4, %25 : vector<8x128xf32>
    %c0_10 = arith.constant 0 : index
    %c0_11 = arith.constant 0 : index
    %27 = vector.load %arg6[%c0_10, %c0_11] : memref<8x128xf32, #tpu.memory_space<vmem>>, vector<8x128xf32>
    tpu.vector_store %arg6[%c0_10, %c0_11], %26 {strides = array<i32>} : memref<8x128xf32, #tpu.memory_space<vmem>>, vector<8x128xf32>,
    %c0_12 = arith.constant 0 : index
    %c0_13 = arith.constant 0 : index
    %28 = vector.load %arg0[%c0_12, %c0_13] : memref<8x128xf32, #tpu.memory_space<vmem>>, vector<8x128xf32>
    %cst_14 = arith.constant dense<0.000000e+00> : vector<8x8xf32>
    %29 = tpu.matmul %28, %26, %cst_14 {dimension_numbers = #tpu.dot_dimension_numbers<[1], [1], [0], [0], [0, 0, 1, 0], [], []>} : vector<8x128xf32>, vector<8x128xf32>, vector<8x8xf32> -> vector<8x8xf32>
    %30 = vector.broadcast %3 : vector<1x8xf32> to vector<8x8xf32>
    %31 = arith.addf %29, %30 : vector<8x8xf32>
    %c0_15 = arith.constant 0 : index
    %c0_16 = arith.constant 0 : index
    %32 = vector.load %arg5[%c0_15, %c0_16] : memref<8x8xf32, #tpu.memory_space<vmem>>, vector<8x8xf32>
    tpu.vector_store %arg5[%c0_15, %c0_16], %31 {strides = array<i32>} : memref<8x8xf32, #tpu.memory_space<vmem>>, vector<8x8xf32>,
    return
  }
}

</mosaic_0001>

<llo_original>
// kernel: tpu_custom_call.1
$region0: #{tpu_custom_call.1}
  #allocation0 [shape = 'u32[]', space=smem, size = 0x4, offset = 0x4, fixed_abs, tag = 'smem constant byte address 0x4 - core index']
  #allocation1 [shape = 'u32[72,128]{1,0:T(1,128)}', space=vmem, size = 0x9000, scoped, tag = 'internal scratch']
  %s0 = inlined_call_operand.vmem [shape: f32[8,128], index: 0, kind: input, shape index: {}]
  %s1 = inlined_call_operand.vmem [shape: f32[8,128], index: 1, kind: input, shape index: {}]
  %s2 = inlined_call_operand.vmem [shape: bf16[160,128], index: 2, kind: input, shape index: {}]
  %s3 = inlined_call_operand.vmem [shape: bf16[256,160], index: 3, kind: input, shape index: {}]
  %s4 = inlined_call_operand.vmem [shape: f32[11,256], index: 4, kind: input, shape index: {}]
  %s5 = inlined_call_operand.hbm [shape: f32[8,8], index: 5, kind: output, shape index: {0}]
  %s6 = inlined_call_operand.hbm [shape: f32[8,128], index: 6, kind: output, shape index: {1}]
  %7 = xla_tuple %s5, %s6
  %s8 = sld [smem:[#allocation0]]
  $region38: #{tpu_custom_call.1} parent=0
    _
  %s10 = ssub.s32 1, %s8
  %s11 = scalar_select 0, %s10, %s8
  $region1: #{tpu_custom_call.1} parent=0
    #allocation2 [shape = 'u8[4096]{0}', space=vmem, size = 0x1000, scoped, tag = 'output window, operand 0, single buffered']
    #allocation3 [shape = 's32[1]{0}', space=sflag, size = 0x4, scoped, tag = 'scoped memory for tpu_custom_call.1']
    #allocation4 [shape = 'u8[4096]{0}', space=vmem, size = 0x1000, scoped, tag = 'output window, operand 1, single buffered']
    #allocation5 [shape = 's32[1]{0}', space=sflag, size = 0x4, scoped, tag = 'scoped memory for tpu_custom_call.1']
    %12 = vsyncpa [#allocation3], 0
    %13 = vsyncpa [#allocation5], 0
    // Predicated region
    $region2: #{tpu_custom_call.1} parent=1 // pred_check
      _
    $region3: #{tpu_custom_call.1} parent=1 // pred_check_branch
      %15 = sbr.rel (0) target = $region5
    $region4: #{tpu_custom_call.1} parent=1 // pred_region
      _
    $region5: #{tpu_custom_call.1} parent=1 // pred_fallthru
      _
    // Predicated region
    $region6: #{tpu_custom_call.1} parent=1 // pred_check
      _
    $region7: #{tpu_custom_call.1} parent=1 // pred_check_branch
      %17 = sbr.rel (0) target = $region9
    $region8: #{tpu_custom_call.1} parent=1 // pred_region
      _
    $region9: #{tpu_custom_call.1} parent=1 // pred_fallthru
      _
    // Predicated region
    $region10: #{tpu_custom_call.1} parent=1 // pred_check
      _
    $region11: #{tpu_custom_call.1} parent=1 // pred_check_branch
      %19 = sbr.rel (0) target = $region13
    $region12: #{tpu_custom_call.1} parent=1 // pred_region
      _
    $region13: #{tpu_custom_call.1} parent=1 // pred_fallthru
      _
    // Predicated region
    $region14: #{tpu_custom_call.1} parent=1 // pred_check
      _
    $region15: #{tpu_custom_call.1} parent=1 // pred_check_branch
      %21 = sbr.rel (0) target = $region17
    $region16: #{tpu_custom_call.1} parent=1 // pred_region
      _
    $region17: #{tpu_custom_call.1} parent=1 // pred_fallthru
      _
    // Predicated region
    $region18: #{tpu_custom_call.1} parent=1 // pred_check
      _
    $region19: #{tpu_custom_call.1} parent=1 // pred_check_branch
      %23 = sbr.rel (0) target = $region21
    $region20: #{tpu_custom_call.1} parent=1 // pred_region
      _
    $region21: #{tpu_custom_call.1} parent=1 // pred_fallthru
      _
    %v25 = vld [vmem:[%s4] sm:$0xff]
    %v26 = vld [vmem:[%s4 + $0x8] sm:$0xff]
    %v27 = vld [vmem:[%s4 + $0x10] sm:$0x7]
    %v28 = vld [vmem:[%s1] sm:$0xff]
    %v29 = vpack.c.bf16 %v28, %v28
    %v30 = vld [vmem:[%s2] sm:$0xf]
    %v31 = vld [vmem:[%s2 + $0x4] sm:$0xf]
    %v32 = vld [vmem:[%s2 + $0x8] sm:$0xf]
    %v33 = vld [vmem:[%s2 + $0xc] sm:$0xf]
    %v34 = vld [vmem:[%s2 + $0x10] sm:$0xf]
    %v35 = vld [vmem:[%s2 + $0x14] sm:$0xf]
    %v36 = vld [vmem:[%s2 + $0x18] sm:$0xf]
    %v37 = vld [vmem:[%s2 + $0x1c] sm:$0xf]
    %v38 = vld [vmem:[%s2 + $0x20] sm:$0xf]
    %v39 = vld [vmem:[%s2 + $0x24] sm:$0xf]
    %v40 = vld [vmem:[%s2 + $0x28] sm:$0xf]
    %v41 = vld [vmem:[%s2 + $0x2c] sm:$0xf]
    %v42 = vld [vmem:[%s2 + $0x30] sm:$0xf]
    %v43 = vld [vmem:[%s2 + $0x34] sm:$0xf]
    %v44 = vld [vmem:[%s2 + $0x38] sm:$0xf]
    %v45 = vld [vmem:[%s2 + $0x3c] sm:$0xf]
    %v46 = vld [vmem:[%s2 + $0x40] sm:$0xf]
    %v47 = vld [vmem:[%s2 + $0x44] sm:$0xf]
    %v48 = vld [vmem:[%s2 + $0x48] sm:$0xf]
    %v49 = vld [vmem:[%s2 + $0x4c] sm:$0xf]
    %v50 = vperm.slane %v25, 0
    %v51 = vperm.slane %v26, 0
    %v72 = vunpack.c.l.b16 %v30
    %v73 = vunpack.c.l.b16 %v31
    %v74 = vunpack.c.l.b16 %v32
    %v75 = vunpack.c.l.b16 %v33
    %v76 = vunpack.c.l.b16 %v34
    %v77 = vunpack.c.l.b16 %v35
    %v78 = vunpack.c.l.b16 %v36
    %v79 = vunpack.c.l.b16 %v37
    %v80 = vunpack.c.l.b16 %v38
    %v81 = vunpack.c.l.b16 %v39
    %v82 = vunpack.c.l.b16 %v40
    %v83 = vunpack.c.l.b16 %v41
    %v84 = vunpack.c.l.b16 %v42
    %v85 = vunpack.c.l.b16 %v43
    %v86 = vunpack.c.l.b16 %v44
    %v87 = vunpack.c.l.b16 %v45
    %v88 = vunpack.c.l.b16 %v46
    %v89 = vunpack.c.l.b16 %v47
    %v90 = vunpack.c.l.b16 %v48
    %v91 = vunpack.c.l.b16 %v49
    %v92 = vpack.c.b16 %v73, %v72
    %v93 = vpack.c.b16 %v75, %v74
    %v94 = vpack.c.b16 %v77, %v76
    %v95 = vpack.c.b16 %v79, %v78
    %v96 = vpack.c.b16 %v81, %v80
    %v97 = vpack.c.b16 %v83, %v82
    %v98 = vpack.c.b16 %v85, %v84
    %v99 = vpack.c.b16 %v87, %v86
    %v100 = vpack.c.b16 %v89, %v88
    %v101 = vpack.c.b16 %v91, %v90
    %112 = vmatpush.bf16.xpose.msra.mxu0 %v99
    %113 = vmatpush.bf16.xpose.msra.mxu0 %v98
    %114 = vmatpush.bf16.xpose.msra.mxu0 %v97
    %115 = vmatpush.bf16.xpose.msra.mxu0 %v96
    %116 = vmatpush.bf16.xpose.msra.mxu0 %v95
    %117 = vmatpush.bf16.xpose.msra.mxu0 %v94
    %118 = vmatpush.bf16.xpose.msra.mxu0 %v93
    %119 = vmatpush.bf16.xpose.msra.mxu0 %v92
    %120 = vmatmul.bf16.gmra.mxu0 %v29
    %v121 = vpop.f32.mrf.mxu0
    %v122 = vadd.f32 %v50, %v121
    %v123 = vpop.f32.mrf.mxu0
    %124 = vdwg.mxu0
    %125 = vmatpush.bf16.xpose.msra.mxu0 0
    %126 = vmatpush.bf16.xpose.msra.mxu0 0
    %127 = vmatpush.bf16.xpose.msra.mxu0 0
    %128 = vmatpush.bf16.xpose.msra.mxu0 0
    %129 = vmatpush.bf16.xpose.msra.mxu0 0
    %130 = vmatpush.bf16.xpose.msra.mxu0 0
    %131 = vmatpush.bf16.xpose.msra.mxu0 %v101
    %132 = vmatpush.bf16.xpose.msra.mxu0 %v100
    %133 = vmatmul.bf16.gmra.mxu0 %v29
    %v134 = vpop.f32.mrf.mxu0
    %v135 = vadd.f32 %v51, %v134
    %v136 = vpop.f32.mrf.mxu0
    %137 = vdwg.mxu0
    %v138 = vmax.f32 %v122, 0.0
    %v139 = vmax.f32 %v135, 0.0
    %v140 = vpack.c.bf16 %v138, %v138
    %v141 = vpack.c.bf16 %v139, %v139
    %v142 = vld [vmem:[%s3] sm:$0xff]
    %v143 = vld [vmem:[%s3 + $0x8] sm:$0xff]
    %v144 = vld [vmem:[%s3 + $0x10] sm:$0xff]
    %v145 = vld [vmem:[%s3 + $0x18] sm:$0xff]
    %v146 = vld [vmem:[%s3 + $0x20] sm:$0xff]
    %v147 = vld [vmem:[%s3 + $0x28] sm:$0xff]
    %v148 = vld [vmem:[%s3 + $0x30] sm:$0xff]
    %v149 = vld [vmem:[%s3 + $0x38] sm:$0xff]
    %v150 = vld [vmem:[%s3 + $0x40] sm:$0xff]
    %v151 = vld [vmem:[%s3 + $0x48] sm:$0xff]
    %v152 = vld [vmem:[%s3 + $0x50] sm:$0xff]
    %v153 = vld [vmem:[%s3 + $0x58] sm:$0xff]
    %v154 = vld [vmem:[%s3 + $0x60] sm:$0xff]
    %v155 = vld [vmem:[%s3 + $0x68] sm:$0xff]
    %v156 = vld [vmem:[%s3 + $0x70] sm:$0xff]
    %v157 = vld [vmem:[%s3 + $0x78] sm:$0xff]
    %v158 = vld [vmem:[%s3 + $0x80] sm:$0xff]
    %v159 = vld [vmem:[%s3 + $0x88] sm:$0xff]
    %v160 = vld [vmem:[%s3 + $0x90] sm:$0xff]
    %v161 = vld [vmem:[%s3 + $0x98] sm:$0xff]
    %v162 = vld [vmem:[%s3 + $0xa0] sm:$0xff]
    %v163 = vld [vmem:[%s3 + $0xa8] sm:$0xff]
    %v164 = vld [vmem:[%s3 + $0xb0] sm:$0xff]
    %v165 = vld [vmem:[%s3 + $0xb8] sm:$0xff]
    %v166 = vld [vmem:[%s3 + $0xc0] sm:$0xff]
    %v167 = vld [vmem:[%s3 + $0xc8] sm:$0xff]
    %v168 = vld [vmem:[%s3 + $0xd0] sm:$0xff]
    %v169 = vld [vmem:[%s3 + $0xd8] sm:$0xff]
    %v170 = vld [vmem:[%s3 + $0xe0] sm:$0xff]
    %v171 = vld [vmem:[%s3 + $0xe8] sm:$0xff]
    %v172 = vld [vmem:[%s3 + $0xf0] sm:$0xff]
    %v173 = vld [vmem:[%s3 + $0xf8] sm:$0xff]
    %v174 = vperm.slane %v25, 1
    %v175 = vperm.slane %v26, 1
    %v208 = vunpack.c.l.b16 %v142
    %v209 = vunpack.c.h.b16 %v142
    %v210 = vunpack.c.l.b16 %v143
    %v211 = vunpack.c.h.b16 %v143
    %v212 = vunpack.c.l.b16 %v144
    %v213 = vunpack.c.h.b16 %v144
    %v214 = vunpack.c.l.b16 %v145
    %v215 = vunpack.c.h.b16 %v145
    %v216 = vunpack.c.l.b16 %v146
    %v217 = vunpack.c.h.b16 %v146
    %v218 = vunpack.c.l.b16 %v147
    %v219 = vunpack.c.h.b16 %v147
    %v220 = vunpack.c.l.b16 %v148
    %v221 = vunpack.c.h.b16 %v148
    %v222 = vunpack.c.l.b16 %v149
    %v223 = vunpack.c.h.b16 %v149
    %v224 = vunpack.c.l.b16 %v150
    %v225 = vunpack.c.h.b16 %v150
    %v226 = vunpack.c.l.b16 %v151
    %v227 = vunpack.c.h.b16 %v151
    %v228 = vunpack.c.l.b16 %v152
    %v229 = vunpack.c.h.b16 %v152
    %v230 = vunpack.c.l.b16 %v153
    %v231 = vunpack.c.h.b16 %v153
    %v232 = vunpack.c.l.b16 %v154
    %v233 = vunpack.c.h.b16 %v154
    %v234 = vunpack.c.l.b16 %v155
    %v235 = vunpack.c.h.b16 %v155
    %v236 = vunpack.c.l.b16 %v156
    %v237 = vunpack.c.h.b16 %v156
    %v238 = vunpack.c.l.b16 %v157
    %v239 = vunpack.c.h.b16 %v157
    %v240 = vunpack.c.l.b16 %v158
    %v241 = vunpack.c.h.b16 %v158
    %v242 = vunpack.c.l.b16 %v159
    %v243 = vunpack.c.h.b16 %v159
    %v244 = vunpack.c.l.b16 %v160
    %v245 = vunpack.c.h.b16 %v160
    %v246 = vunpack.c.l.b16 %v161
    %v247 = vunpack.c.h.b16 %v161
    %v248 = vunpack.c.l.b16 %v162
    %v249 = vunpack.c.h.b16 %v162
    %v250 = vunpack.c.l.b16 %v163
    %v251 = vunpack.c.h.b16 %v163
    %v252 = vunpack.c.l.b16 %v164
    %v253 = vunpack.c.h.b16 %v164
    %v254 = vunpack.c.l.b16 %v165
    %v255 = vunpack.c.h.b16 %v165
    %v256 = vunpack.c.l.b16 %v166
    %v257 = vunpack.c.h.b16 %v166
    %v258 = vunpack.c.l.b16 %v167
    %v259 = vunpack.c.h.b16 %v167
    %v260 = vunpack.c.l.b16 %v168
    %v261 = vunpack.c.h.b16 %v168
    %v262 = vunpack.c.l.b16 %v169
    %v263 = vunpack.c.h.b16 %v169
    %v264 = vunpack.c.l.b16 %v170
    %v265 = vunpack.c.h.b16 %v170
    %v266 = vunpack.c.l.b16 %v171
    %v267 = vunpack.c.h.b16 %v171
    %v268 = vunpack.c.l.b16 %v172
    %v269 = vunpack.c.h.b16 %v172
    %v270 = vunpack.c.l.b16 %v173
    %v271 = vunpack.c.h.b16 %v173
    %v272 = vpack.c.b16 %v210, %v208
    %v273 = vpack.c.b16 %v211, %v209
    %v274 = vpack.c.b16 %v214, %v212
    %v275 = vpack.c.b16 %v215, %v213
    %v276 = vpack.c.b16 %v218, %v216
    %v277 = vpack.c.b16 %v219, %v217
    %v278 = vpack.c.b16 %v222, %v220
    %v279 = vpack.c.b16 %v223, %v221
    %v280 = vpack.c.b16 %v226, %v224
    %v281 = vpack.c.b16 %v227, %v225
    %v282 = vpack.c.b16 %v230, %v228
    %v283 = vpack.c.b16 %v231, %v229
    %v284 = vpack.c.b16 %v234, %v232
    %v285 = vpack.c.b16 %v235, %v233
    %v286 = vpack.c.b16 %v238, %v236
    %v287 = vpack.c.b16 %v239, %v237
    %v288 = vpack.c.b16 %v242, %v240
    %v289 = vpack.c.b16 %v243, %v241
    %v290 = vpack.c.b16 %v246, %v244
    %v291 = vpack.c.b16 %v247, %v245
    %v292 = vpack.c.b16 %v250, %v248
    %v293 = vpack.c.b16 %v251, %v249
    %v294 = vpack.c.b16 %v254, %v252
    %v295 = vpack.c.b16 %v255, %v253
    %v296 = vpack.c.b16 %v258, %v256
    %v297 = vpack.c.b16 %v259, %v257
    %v298 = vpack.c.b16 %v262, %v260
    %v299 = vpack.c.b16 %v263, %v261
    %v300 = vpack.c.b16 %v266, %v264
    %v301 = vpack.c.b16 %v267, %v265
    %v302 = vpack.c.b16 %v270, %v268
    %v303 = vpack.c.b16 %v271, %v269
    %vm320 = vcmask 261120
    %v322 = vsel %vm320, %v141, 0
    %v325 = vsel %vm320, %v273, 0
    %v328 = vsel %vm320, %v275, 0
    %v331 = vsel %vm320, %v277, 0
    %v334 = vsel %vm320, %v279, 0
    %v337 = vsel %vm320, %v281, 0
    %v340 = vsel %vm320, %v283, 0
    %v343 = vsel %vm320, %v285, 0
    %v346 = vsel %vm320, %v287, 0
    %v349 = vsel %vm320, %v289, 0
    %v352 = vsel %vm320, %v291, 0
    %v355 = vsel %vm320, %v293, 0
    %v358 = vsel %vm320, %v295, 0
    %v361 = vsel %vm320, %v297, 0
    %v364 = vsel %vm320, %v299, 0
    %v367 = vsel %vm320, %v301, 0
    %v370 = vsel %vm320, %v303, 0
    %372 = vmatpush.bf16.xpose.msra.mxu0 %v286
    %373 = vmatpush.bf16.xpose.msra.mxu0 %v284
    %374 = vmatpush.bf16.xpose.msra.mxu0 %v282
    %375 = vmatpush.bf16.xpose.msra.mxu0 %v280
    %376 = vmatpush.bf16.xpose.msra.mxu0 %v278
    %377 = vmatpush.bf16.xpose.msra.mxu0 %v276
    %378 = vmatpush.bf16.xpose.msra.mxu0 %v274
    %379 = vmatpush.bf16.xpose.msra.mxu0 %v272
    %380 = vmatmul.bf16.gmra.mxu0 %v140
    %v381 = vpop.f32.mrf.mxu0
    %v382 = vadd.f32 %v174, %v381
    %v383 = vpop.f32.mrf.mxu0
    %384 = vdwg.mxu0
    %385 = vmatpush.bf16.xpose.msra.mxu0 %v346
    %386 = vmatpush.bf16.xpose.msra.mxu0 %v343
    %387 = vmatpush.bf16.xpose.msra.mxu0 %v340
    %388 = vmatpush.bf16.xpose.msra.mxu0 %v337
    %389 = vmatpush.bf16.xpose.msra.mxu0 %v334
    %390 = vmatpush.bf16.xpose.msra.mxu0 %v331
    %391 = vmatpush.bf16.xpose.msra.mxu0 %v328
    %392 = vmatpush.bf16.xpose.msra.mxu0 %v325
    %393 = vmatmul.bf16.gmra.mxu0 %v322
    %v394 = vpop.f32.mrf.mxu0
    %v395 = vadd.f32 %v382, %v394
    %v396 = vpop.f32.mrf.mxu0
    %397 = vdwg.mxu0
    %398 = vmatpush.bf16.xpose.msra.mxu0 %v302
    %399 = vmatpush.bf16.xpose.msra.mxu0 %v300
    %400 = vmatpush.bf16.xpose.msra.mxu0 %v298
    %401 = vmatpush.bf16.xpose.msra.mxu0 %v296
    %402 = vmatpush.bf16.xpose.msra.mxu0 %v294
    %403 = vmatpush.bf16.xpose.msra.mxu0 %v292
    %404 = vmatpush.bf16.xpose.msra.mxu0 %v290
    %405 = vmatpush.bf16.xpose.msra.mxu0 %v288
    %406 = vmatmul.bf16.gmra.mxu0 %v140
    %v407 = vpop.f32.mrf.mxu0
    %v408 = vadd.f32 %v175, %v407
    %v409 = vpop.f32.mrf.mxu0
    %410 = vdwg.mxu0
    %411 = vmatpush.bf16.xpose.msra.mxu0 %v370
    %412 = vmatpush.bf16.xpose.msra.mxu0 %v367
    %413 = vmatpush.bf16.xpose.msra.mxu0 %v364
    %414 = vmatpush.bf16.xpose.msra.mxu0 %v361
    %415 = vmatpush.bf16.xpose.msra.mxu0 %v358
    %416 = vmatpush.bf16.xpose.msra.mxu0 %v355
    %417 = vmatpush.bf16.xpose.msra.mxu0 %v352
    %418 = vmatpush.bf16.xpose.msra.mxu0 %v349
    %419 = vmatmul.bf16.gmra.mxu0 %v322
    %v420 = vpop.f32.mrf.mxu0
    %v421 = vadd.f32 %v408, %v420
    %v422 = vpop.f32.mrf.mxu0
    %423 = vdwg.mxu0
    %v424 = vxor.u32 %v421, 2147483648
    %v425 = vmul.f32 %v424, 1.442695
    %v426 = vpow.pop %v425
    %v427 = vadd.f32 %v426, 1.0
    %v428 = vrcp.pop %v427
    %v429 = vmul.f32 %v427, %v428
    %v430 = vsub.f32 1.0, %v429
    %v431 = vmul.f32 %v428, %v430
    %v432 = vadd.f32 %v428, %v431
    %vm433 = vweird.f32 %v427
    %vm434 = vweird.f32 %v428
    %vm435 = vmor %vm433, %vm434
    %v436 = vsel %vm435, %v428, %v432
    %v437 = vand.u32 2147483647, %v427
    %vm438 = vcmp.eq.f32.partialorder %v437, 8.507059e+37
    %v439 = vand.u32 %v427, 2147483648
    %v440 = vor.u32 1.1754944e-38, %v439
    %v441 = vsel %vm438, %v440, %v436
    %v442 = vmul.f32 1.0, %v441
    %v443 = vmul.f32 %v395, %v442
    %v445 = vrot.slane %v443, 5
    %v447 = vadd.f32 %v25, %v445
    %v448 = vadd.f32 %v27, %v445
    %449 = vst [vmem:[#allocation4 - $0x3] sm:$0xf8] %v447
    %450 = vst [vmem:[#allocation4 + $0x5] sm:$0x7] %v448
    %v451 = vld [vmem:[%s0] sm:$0xff]
    %v452 = vperm.slane %v25, 2
    %vm455 = vcmask 1044480
    %v456 = vrot.slane %v447, 3
    %v457 = vrot.slane %v448, 3
    %v458 = vsel %vm455, %v456, %v457
    %460 = vmatpush.xpose.msra.mxu0 0.0
    %461 = vmatpush.xpose.msra.mxu0 0.0
    %462 = vmatpush.xpose.msra.mxu0 0.0
    %463 = vmatpush.xpose.msra.mxu0 0.0
    %464 = vmatpush.xpose.msra.mxu0 0.0
    %465 = vmatpush.xpose.msra.mxu0 0.0
    %466 = vmatpush.xpose.msra.mxu0 0.0
    %467 = vmatpush.xpose.msra.mxu0 0.0
    %468 = vmatpush.xpose.msra.mxu0 0.0
    %469 = vmatpush.xpose.msra.mxu0 0.0
    %470 = vmatpush.xpose.msra.mxu0 0.0
    %471 = vmatpush.xpose.msra.mxu0 0.0
    %472 = vmatpush.xpose.msra.mxu0 0.0
    %473 = vmatpush.xpose.msra.mxu0 0.0
    %474 = vmatpush.xpose.msra.mxu0 0.0
    %475 = vmatpush.xpose.msra.mxu0 %v458
    %476 = vmatmul.f32.gmra.mxu0 %v451
    %v477 = vpop.f32.mrf.mxu0
    %v478 = vadd.f32 %v452, %v477
    %479 = vdwg.mxu0
    %vm480 = vcmask 64512
    %481 = vst.msk [vmem:[#allocation2] sm:$0xff] %vm480, %v478
    // Predicated region
    $region22: #{tpu_custom_call.1} parent=1 // pred_check
      _
    $region23: #{tpu_custom_call.1} parent=1 // pred_check_branch
      %483 = sbr.rel (0) target = $region25
    $region24: #{tpu_custom_call.1} parent=1 // pred_region
      %485 = vsyncadd [#allocation3], 0
      %s487 = sshll.u32 [#allocation2], 4
      %s488 = int_to_ptr.vmem [resolvable:$true] %s487
      %s489 = sshll.u32 %s5, 4
      %s490 = int_to_ptr.hbm [resolvable:$true] %s489
      %492 = dma.vmem_to_hbm [thread:$0]  %s488, 128, %s490, [#allocation3]
    $region25: #{tpu_custom_call.1} parent=1 // pred_fallthru
      _
    // Predicated region
    $region26: #{tpu_custom_call.1} parent=1 // pred_check
      _
    $region27: #{tpu_custom_call.1} parent=1 // pred_check_branch
      %494 = sbr.rel (0) target = $region29
    $region28: #{tpu_custom_call.1} parent=1 // pred_region
      %496 = vsyncadd [#allocation5], 0
      %s498 = sshll.u32 [#allocation4], 4
      %s499 = int_to_ptr.vmem [resolvable:$true] %s498
      %s500 = sshll.u32 %s6, 4
      %s501 = int_to_ptr.hbm [resolvable:$true] %s500
      %503 = dma.vmem_to_hbm [thread:$0]  %s499, 128, %s501, [#allocation5]
    $region29: #{tpu_custom_call.1} parent=1 // pred_fallthru
      _
    // Predicated region
    $region30: #{tpu_custom_call.1} parent=1 // pred_check
      _
    $region31: #{tpu_custom_call.1} parent=1 // pred_check_branch
      %505 = sbr.rel (0) target = $region33
    $region32: #{tpu_custom_call.1} parent=1 // pred_region
      %507 = dma.done [#allocation3], 128
    $region33: #{tpu_custom_call.1} parent=1 // pred_fallthru
      _
    // Predicated region
    $region34: #{tpu_custom_call.1} parent=1 // pred_check
      _
    $region35: #{tpu_custom_call.1} parent=1 // pred_check_branch
      %509 = sbr.rel (0) target = $region37
    $region36: #{tpu_custom_call.1} parent=1 // pred_region
      %511 = dma.done [#allocation5], 128
    $region37: #{tpu_custom_call.1} parent=1 // pred_fallthru
      _
    %512 = vsyncpa [#allocation3], 1
    %513 = vsyncpa [#allocation5], 1

</llo_original>
